<compile_context>
chip_gen: v7x
topology: tpu7x:2x2x1
jax: 0.10.0
libtpu: 0.0.40
codegen_flags: <defaults>
</compile_context>

<pallas_src>
import jax
import jax.numpy as jnp
from jax.experimental import pallas as pl
from jax.experimental.pallas import tpu as pltpu


def softmax_w_kernel(w_ref, ws_ref):
    # One-shot, whole (V, T) weight resident in VMEM.
    # Numerically-stable softmax over axis 0 (vocab dim) == torch.softmax(w, dim=0).
    w = w_ref[...].astype(jnp.float32)
    w_max = jnp.max(w, axis=0, keepdims=True)
    e = jnp.exp(w - w_max)
    ws_ref[...] = (e / jnp.sum(e, axis=0, keepdims=True)).astype(ws_ref.dtype)


def matmul_kernel(w_ref, x_ref, o_ref):
    # w_ref: (V, T) bf16 softmaxed weight (constant across the grid),
    # x_ref: (T, tn) column tile, o_ref: (V, tn) f32 output tile.
    # bf16 MXU operands, f32 accumulation.
    o_ref[...] = jnp.dot(
        w_ref[...],
        x_ref[...].astype(jnp.bfloat16),
        preferred_element_type=jnp.float32,
    ).astype(o_ref.dtype)


def _pick_tn(N):
    # Single block for small problems; wide lane-dense tiles (512-2048) otherwise.
    if N <= 2048:
        return N
    for cand in (2048, 1024, 512, 256, 128):
        if N % cand == 0:
            return cand
    return N  # fallback: full-extent block (always legal)


def conv1d_softmax(w, x, *, tn=None):
    V, T = w.shape
    T2, N = x.shape
    assert T == T2, "x first dim must equal topic_size"
    if tn is None:
        tn = _pick_tn(N)
    assert N % tn == 0, "N must be a multiple of the column tile"

    # Pass 1: softmax of the weight, computed exactly once (kept in bf16 so the
    # matmul kernel does zero per-step work on it).
    w_soft = pl.pallas_call(
        softmax_w_kernel,
        out_shape=jax.ShapeDtypeStruct((V, T), jnp.bfloat16),
        in_specs=[pl.BlockSpec(memory_space=pltpu.MemorySpace.VMEM)],
        out_specs=pl.BlockSpec(memory_space=pltpu.MemorySpace.VMEM),
    )(w)

    # Pass 2: streamed matmul over column tiles of x.
    # TODO(synk): if V grows to a real vocab size, add a second ("parallel") grid
    # axis tiling V (smaller tv on v7x's 64 MiB VMEM) and set vmem_limit_bytes.
    grid = (N // tn,)
    return pl.pallas_call(
        matmul_kernel,
        out_shape=jax.ShapeDtypeStruct((V, N), jnp.float32),
        grid_spec=pltpu.PrefetchScalarGridSpec(
            num_scalar_prefetch=0,
            grid=grid,
            in_specs=[
                pl.BlockSpec((V, T), lambda j: (0, 0)),   # resident softmaxed weight
                pl.BlockSpec((T, tn), lambda j: (0, j)),  # column tile of x
            ],
            out_specs=pl.BlockSpec((V, tn), lambda j: (0, j)),
        ),
        compiler_params=pltpu.CompilerParams(
            dimension_semantics=("parallel",),
        ),
    )(w_soft, x)


if __name__ == "__main__":
    # Small, deterministic shapes consistent with the module:
    #   voc_size V = 256, topic_size T = 64, N (flattened trailing dims of x) = 256
    V, T, N = 256, 64, 256

    key = jax.random.PRNGKey(0)
    kw, kx = jax.random.split(key)

    # nn.init.normal_(w, std=0.02) equivalent, deterministic
    w = (0.02 * jax.random.normal(kw, (V, T))).astype(jnp.float32)
    x = jax.random.normal(kx, (T, N), dtype=jnp.float32)

    out = conv1d_softmax(w, x)
    out = jax.block_until_ready(out)

    # Reference (plain JAX, f32) check of the forward-pass semantics.
    # Tolerance relaxed for the bf16 MXU operands (f32 accumulation).
    w_soft_ref = jax.nn.softmax(w, axis=0)
    ref = w_soft_ref @ x
    assert out.shape == (V, N)
    assert jnp.allclose(out, ref, atol=5e-3, rtol=2e-2), "mismatch vs reference"

    print("KERNEL_OK")
</pallas_src>

<mosaic_0001>
module attributes {stable_mosaic.version = 11 : i64} {
  func.func @softmax_w_kernel(%arg0: memref<256x64xf32, #tpu.memory_space<vmem>>, %arg1: memref<256x64xbf16, #tpu.memory_space<vmem>>) attributes {dimension_semantics = [], scalar_prefetch = 0 : i64, scratch_operands = 0 : i64, tpu.core_type = #tpu.core_type<tc>} {
    %c0 = arith.constant 0 : index
    %c0_0 = arith.constant 0 : index
    %0 = vector.load %arg0[%c0, %c0_0] : memref<256x64xf32, #tpu.memory_space<vmem>>, vector<256x64xf32>
    %cst = arith.constant dense<0xFF800000> : vector<64xf32>
    %1 = vector.multi_reduction <maximumf>, %0, %cst [0] : vector<256x64xf32> to vector<64xf32>
    %2 = vector.shape_cast %1 : vector<64xf32> to vector<1x64xf32>
    %3 = vector.broadcast %2 : vector<1x64xf32> to vector<256x64xf32>
    %4 = arith.subf %0, %3 : vector<256x64xf32>
    %5 = math.exp %4 : vector<256x64xf32>
    %cst_1 = arith.constant dense<0.000000e+00> : vector<64xf32>
    %6 = vector.multi_reduction <add>, %5, %cst_1 [0] : vector<256x64xf32> to vector<64xf32>
    %7 = vector.shape_cast %6 : vector<64xf32> to vector<1x64xf32>
    %8 = vector.broadcast %7 : vector<1x64xf32> to vector<256x64xf32>
    %9 = arith.divf %5, %8 : vector<256x64xf32>
    %10 = arith.truncf %9 : vector<256x64xf32> to vector<256x64xbf16>
    %c0_2 = arith.constant 0 : index
    %c0_3 = arith.constant 0 : index
    %11 = vector.load %arg1[%c0_2, %c0_3] : memref<256x64xbf16, #tpu.memory_space<vmem>>, vector<256x64xbf16>
    tpu.vector_store %arg1[%c0_2, %c0_3], %10 {strides = array<i32>} : memref<256x64xbf16, #tpu.memory_space<vmem>>, vector<256x64xbf16>,
    return
  }
}

</mosaic_0001>

<llo_original>
// kernel: tpu_custom_call.1
$region0: #{tpu_custom_call.1}
  #allocation0 [shape = 'u32[]', space=smem, size = 0x4, offset = 0x4, fixed_abs, tag = 'smem constant byte address 0x4 - core index']
  #allocation1 [shape = 'u32[144,128]{1,0:T(1,128)}', space=vmem, size = 0x12000, scoped, tag = 'internal scratch']
  %s0 = inlined_call_operand.vmem [shape: f32[256,64], index: 0, kind: input, shape index: {}]
  %s1 = inlined_call_operand.vmem [shape: bf16[256,64], index: 1, kind: output, shape index: {}]
  %s2 = sld [smem:[#allocation0]]
  $region14: #{tpu_custom_call.1} parent=0
    _
  %s4 = ssub.s32 1, %s2
  %s5 = scalar_select 0, %s4, %s2
  // Predicated region
  $region2: #{tpu_custom_call.1} parent=0 // pred_check
    _
  $region3: #{tpu_custom_call.1} parent=0 // pred_check_branch
    %7 = sbr.rel (0) target = $region5
  $region4: #{tpu_custom_call.1} parent=0 // pred_region
    _
  $region5: #{tpu_custom_call.1} parent=0 // pred_fallthru
    _
  %v8 = vld [vmem:[%s0] sm:$0xff]
  %v9 = vld [vmem:[%s0 + $0x8] sm:$0xff]
  %v10 = vld [vmem:[%s0 + $0x10] sm:$0xff]
  %v11 = vld [vmem:[%s0 + $0x18] sm:$0xff]
  %v12 = vld [vmem:[%s0 + $0x20] sm:$0xff]
  %v13 = vld [vmem:[%s0 + $0x28] sm:$0xff]
  %v14 = vld [vmem:[%s0 + $0x30] sm:$0xff]
  %v15 = vld [vmem:[%s0 + $0x38] sm:$0xff]
  %v16 = vld [vmem:[%s0 + $0x40] sm:$0xff]
  %v17 = vld [vmem:[%s0 + $0x48] sm:$0xff]
  %v18 = vld [vmem:[%s0 + $0x50] sm:$0xff]
  %v19 = vld [vmem:[%s0 + $0x58] sm:$0xff]
  %v20 = vld [vmem:[%s0 + $0x60] sm:$0xff]
  %v21 = vld [vmem:[%s0 + $0x68] sm:$0xff]
  %v22 = vld [vmem:[%s0 + $0x70] sm:$0xff]
  %v23 = vld [vmem:[%s0 + $0x78] sm:$0xff]
  %v24 = vld [vmem:[%s0 + $0x80] sm:$0xff]
  %v25 = vld [vmem:[%s0 + $0x88] sm:$0xff]
  %v26 = vld [vmem:[%s0 + $0x90] sm:$0xff]
  %v27 = vld [vmem:[%s0 + $0x98] sm:$0xff]
  %v28 = vld [vmem:[%s0 + $0xa0] sm:$0xff]
  %v29 = vld [vmem:[%s0 + $0xa8] sm:$0xff]
  %v30 = vld [vmem:[%s0 + $0xb0] sm:$0xff]
  %v31 = vld [vmem:[%s0 + $0xb8] sm:$0xff]
  %v32 = vld [vmem:[%s0 + $0xc0] sm:$0xff]
  %v33 = vld [vmem:[%s0 + $0xc8] sm:$0xff]
  %v34 = vld [vmem:[%s0 + $0xd0] sm:$0xff]
  %v35 = vld [vmem:[%s0 + $0xd8] sm:$0xff]
  %v36 = vld [vmem:[%s0 + $0xe0] sm:$0xff]
  %v37 = vld [vmem:[%s0 + $0xe8] sm:$0xff]
  %v38 = vld [vmem:[%s0 + $0xf0] sm:$0xff]
  %v39 = vld [vmem:[%s0 + $0xf8] sm:$0xff]
  %vm40 = vcmask 523264
  %v41 = vsel %vm40, %v8, -inf
  %v42 = vsel %vm40, %v9, -inf
  %v43 = vsel %vm40, %v10, -inf
  %v44 = vsel %vm40, %v11, -inf
  %v45 = vsel %vm40, %v12, -inf
  %v46 = vmax.f32 %v41, %v45
  %v47 = vsel %vm40, %v13, -inf
  %v48 = vmax.f32 %v42, %v47
  %v49 = vsel %vm40, %v14, -inf
  %v50 = vmax.f32 %v43, %v49
  %v51 = vsel %vm40, %v15, -inf
  %v52 = vmax.f32 %v44, %v51
  %v53 = vsel %vm40, %v16, -inf
  %v54 = vmax.f32 %v46, %v53
  %v55 = vsel %vm40, %v17, -inf
  %v56 = vmax.f32 %v48, %v55
  %v57 = vsel %vm40, %v18, -inf
  %v58 = vmax.f32 %v50, %v57
  %v59 = vsel %vm40, %v19, -inf
  %v60 = vmax.f32 %v52, %v59
  %v61 = vsel %vm40, %v20, -inf
  %v62 = vmax.f32 %v54, %v61
  %v63 = vsel %vm40, %v21, -inf
  %v64 = vmax.f32 %v56, %v63
  %v65 = vsel %vm40, %v22, -inf
  %v66 = vmax.f32 %v58, %v65
  %v67 = vsel %vm40, %v23, -inf
  %v68 = vmax.f32 %v60, %v67
  %v69 = vsel %vm40, %v24, -inf
  %v70 = vmax.f32 %v62, %v69
  %v71 = vsel %vm40, %v25, -inf
  %v72 = vmax.f32 %v64, %v71
  %v73 = vsel %vm40, %v26, -inf
  %v74 = vmax.f32 %v66, %v73
  %v75 = vsel %vm40, %v27, -inf
  %v76 = vmax.f32 %v68, %v75
  %v77 = vsel %vm40, %v28, -inf
  %v78 = vmax.f32 %v70, %v77
  %v79 = vsel %vm40, %v29, -inf
  %v80 = vmax.f32 %v72, %v79
  %v81 = vsel %vm40, %v30, -inf
  %v82 = vmax.f32 %v74, %v81
  %v83 = vsel %vm40, %v31, -inf
  %v84 = vmax.f32 %v76, %v83
  %v85 = vsel %vm40, %v32, -inf
  %v86 = vmax.f32 %v78, %v85
  %v87 = vsel %vm40, %v33, -inf
  %v88 = vmax.f32 %v80, %v87
  %v89 = vsel %vm40, %v34, -inf
  %v90 = vmax.f32 %v82, %v89
  %v91 = vsel %vm40, %v35, -inf
  %v92 = vmax.f32 %v84, %v91
  %v93 = vsel %vm40, %v36, -inf
  %v94 = vmax.f32 %v86, %v93
  %v95 = vsel %vm40, %v37, -inf
  %v96 = vmax.f32 %v88, %v95
  %v97 = vsel %vm40, %v38, -inf
  %v98 = vmax.f32 %v90, %v97
  %v99 = vsel %vm40, %v39, -inf
  %v100 = vmax.f32 %v92, %v99
  %v101 = vmax.f32 %v94, %v96
  %v102 = vmax.f32 %v98, %v100
  %v103 = vmax.f32 %v101, %v102
  %v104 = vrot.slane %v103, 4
  %v105 = vmax.f32 %v103, %v104
  %v106 = vrot.slane %v105, 2
  %v107 = vmax.f32 %v105, %v106
  %v108 = vrot.slane %v107, 1
  %v109 = vmax.f32 %v107, %v108
  %v110 = vsub.f32 %v8, %v109
  %v111 = vsub.f32 %v9, %v109
  %v112 = vsub.f32 %v10, %v109
  %v113 = vsub.f32 %v11, %v109
  %v114 = vsub.f32 %v12, %v109
  %v115 = vsub.f32 %v13, %v109
  %v116 = vsub.f32 %v14, %v109
  %v117 = vsub.f32 %v15, %v109
  %v118 = vsub.f32 %v16, %v109
  %v119 = vsub.f32 %v17, %v109
  %v120 = vsub.f32 %v18, %v109
  %v121 = vsub.f32 %v19, %v109
  %v122 = vsub.f32 %v20, %v109
  %v123 = vsub.f32 %v21, %v109
  %v124 = vsub.f32 %v22, %v109
  %v125 = vsub.f32 %v23, %v109
  %v126 = vsub.f32 %v24, %v109
  %v127 = vsub.f32 %v25, %v109
  %v128 = vsub.f32 %v26, %v109
  %v129 = vsub.f32 %v27, %v109
  %v130 = vsub.f32 %v28, %v109
  %v131 = vsub.f32 %v29, %v109
  %v132 = vsub.f32 %v30, %v109
  %v133 = vsub.f32 %v31, %v109
  %v134 = vsub.f32 %v32, %v109
  %v135 = vsub.f32 %v33, %v109
  %v136 = vsub.f32 %v34, %v109
  %v137 = vsub.f32 %v35, %v109
  %v138 = vsub.f32 %v36, %v109
  %v139 = vsub.f32 %v37, %v109
  %v140 = vsub.f32 %v38, %v109
  %v141 = vsub.f32 %v39, %v109
  %v142 = vmul.f32 %v110, 1.442695
  %v143 = vpow.pop %v142
  %v144 = vmul.f32 %v111, 1.442695
  %v145 = vpow.pop %v144
  %v146 = vmul.f32 %v112, 1.442695
  %v147 = vpow.pop %v146
  %v148 = vmul.f32 %v113, 1.442695
  %v149 = vpow.pop %v148
  %v150 = vmul.f32 %v114, 1.442695
  %v151 = vpow.pop %v150
  %v152 = vmul.f32 %v115, 1.442695
  %v153 = vpow.pop %v152
  %v154 = vmul.f32 %v116, 1.442695
  %v155 = vpow.pop %v154
  %v156 = vmul.f32 %v117, 1.442695
  %v157 = vpow.pop %v156
  %v158 = vmul.f32 %v118, 1.442695
  %v159 = vpow.pop %v158
  %v160 = vmul.f32 %v119, 1.442695
  %v161 = vpow.pop %v160
  %v162 = vmul.f32 %v120, 1.442695
  %v163 = vpow.pop %v162
  %v164 = vmul.f32 %v121, 1.442695
  %v165 = vpow.pop %v164
  %v166 = vmul.f32 %v122, 1.442695
  %v167 = vpow.pop %v166
  %v168 = vmul.f32 %v123, 1.442695
  %v169 = vpow.pop %v168
  %v170 = vmul.f32 %v124, 1.442695
  %v171 = vpow.pop %v170
  %v172 = vmul.f32 %v125, 1.442695
  %v173 = vpow.pop %v172
  %v174 = vmul.f32 %v126, 1.442695
  %v175 = vpow.pop %v174
  %v176 = vmul.f32 %v127, 1.442695
  %v177 = vpow.pop %v176
  %v178 = vmul.f32 %v128, 1.442695
  %v179 = vpow.pop %v178
  %v180 = vmul.f32 %v129, 1.442695
  %v181 = vpow.pop %v180
  %v182 = vmul.f32 %v130, 1.442695
  %v183 = vpow.pop %v182
  %v184 = vmul.f32 %v131, 1.442695
  %v185 = vpow.pop %v184
  %v186 = vmul.f32 %v132, 1.442695
  %v187 = vpow.pop %v186
  %v188 = vmul.f32 %v133, 1.442695
  %v189 = vpow.pop %v188
  %v190 = vmul.f32 %v134, 1.442695
  %v191 = vpow.pop %v190
  %v192 = vmul.f32 %v135, 1.442695
  %v193 = vpow.pop %v192
  %v194 = vmul.f32 %v136, 1.442695
  %v195 = vpow.pop %v194
  %v196 = vmul.f32 %v137, 1.442695
  %v197 = vpow.pop %v196
  %v198 = vmul.f32 %v138, 1.442695
  %v199 = vpow.pop %v198
  %v200 = vmul.f32 %v139, 1.442695
  %v201 = vpow.pop %v200
  %v202 = vmul.f32 %v140, 1.442695
  %v203 = vpow.pop %v202
  %v204 = vmul.f32 %v141, 1.442695
  %v205 = vpow.pop %v204
  %v206 = vsel %vm40, %v143, 0.0
  %v207 = vsel %vm40, %v145, 0.0
  %v208 = vadd.f32 %v206, %v207
  %v209 = vsel %vm40, %v147, 0.0
  %v210 = vadd.f32 %v208, %v209
  %v211 = vsel %vm40, %v149, 0.0
  %v212 = vadd.f32 %v210, %v211
  %v213 = vsel %vm40, %v151, 0.0
  %v214 = vadd.f32 %v212, %v213
  %v215 = vsel %vm40, %v153, 0.0
  %v216 = vadd.f32 %v214, %v215
  %v217 = vsel %vm40, %v155, 0.0
  %v218 = vadd.f32 %v216, %v217
  %v219 = vsel %vm40, %v157, 0.0
  %v220 = vadd.f32 %v218, %v219
  %v221 = vsel %vm40, %v159, 0.0
  %v222 = vadd.f32 %v220, %v221
  %v223 = vsel %vm40, %v161, 0.0
  %v224 = vadd.f32 %v222, %v223
  %v225 = vsel %vm40, %v163, 0.0
  %v226 = vadd.f32 %v224, %v225
  %v227 = vsel %vm40, %v165, 0.0
  %v228 = vadd.f32 %v226, %v227
  %v229 = vsel %vm40, %v167, 0.0
  %v230 = vadd.f32 %v228, %v229
  %v231 = vsel %vm40, %v169, 0.0
  %v232 = vadd.f32 %v230, %v231
  %v233 = vsel %vm40, %v171, 0.0
  %v234 = vadd.f32 %v232, %v233
  %v235 = vsel %vm40, %v173, 0.0
  %v236 = vadd.f32 %v234, %v235
  %v237 = vsel %vm40, %v175, 0.0
  %v238 = vadd.f32 %v236, %v237
  %v239 = vsel %vm40, %v177, 0.0
  %v240 = vadd.f32 %v238, %v239
  %v241 = vsel %vm40, %v179, 0.0
  %v242 = vadd.f32 %v240, %v241
  %v243 = vsel %vm40, %v181, 0.0
  %v244 = vadd.f32 %v242, %v243
  %v245 = vsel %vm40, %v183, 0.0
  %v246 = vadd.f32 %v244, %v245
  %v247 = vsel %vm40, %v185, 0.0
  %v248 = vadd.f32 %v246, %v247
  %v249 = vsel %vm40, %v187, 0.0
  %v250 = vadd.f32 %v248, %v249
  %v251 = vsel %vm40, %v189, 0.0
  %v252 = vadd.f32 %v250, %v251
  %v253 = vsel %vm40, %v191, 0.0
  %v254 = vadd.f32 %v252, %v253
  %v255 = vsel %vm40, %v193, 0.0
  %v256 = vadd.f32 %v254, %v255
  %v257 = vsel %vm40, %v195, 0.0
  %v258 = vadd.f32 %v256, %v257
  %v259 = vsel %vm40, %v197, 0.0
  %v260 = vadd.f32 %v258, %v259
  %v261 = vsel %vm40, %v199, 0.0
  %v262 = vadd.f32 %v260, %v261
  %v263 = vsel %vm40, %v201, 0.0
  %v264 = vadd.f32 %v262, %v263
  %v265 = vsel %vm40, %v203, 0.0
  %v266 = vadd.f32 %v264, %v265
  %v267 = vsel %vm40, %v205, 0.0
  %v268 = vadd.f32 %v266, %v267
  %v269 = vrot.slane %v268, 4
  %v270 = vadd.f32 %v268, %v269
  %v271 = vrot.slane %v270, 2
  %v272 = vadd.f32 %v270, %v271
  %v273 = vrot.slane %v272, 1
  %v274 = vadd.f32 %v272, %v273
  %v275 = vrcp.pop %v274
  %v276 = vmul.f32 %v143, %v275
  %v277 = vmul.f32 %v145, %v275
  %v278 = vmul.f32 %v147, %v275
  %v279 = vmul.f32 %v149, %v275
  %v280 = vmul.f32 %v151, %v275
  %v281 = vmul.f32 %v153, %v275
  %v282 = vmul.f32 %v155, %v275
  %v283 = vmul.f32 %v157, %v275
  %v284 = vmul.f32 %v159, %v275
  %v285 = vmul.f32 %v161, %v275
  %v286 = vmul.f32 %v163, %v275
  %v287 = vmul.f32 %v165, %v275
  %v288 = vmul.f32 %v167, %v275
  %v289 = vmul.f32 %v169, %v275
  %v290 = vmul.f32 %v171, %v275
  %v291 = vmul.f32 %v173, %v275
  %v292 = vmul.f32 %v175, %v275
  %v293 = vmul.f32 %v177, %v275
  %v294 = vmul.f32 %v179, %v275
  %v295 = vmul.f32 %v181, %v275
  %v296 = vmul.f32 %v183, %v275
  %v297 = vmul.f32 %v185, %v275
  %v298 = vmul.f32 %v187, %v275
  %v299 = vmul.f32 %v189, %v275
  %v300 = vmul.f32 %v191, %v275
  %v301 = vmul.f32 %v193, %v275
  %v302 = vmul.f32 %v195, %v275
  %v303 = vmul.f32 %v197, %v275
  %v304 = vmul.f32 %v199, %v275
  %v305 = vmul.f32 %v201, %v275
  %v306 = vmul.f32 %v203, %v275
  %v307 = vmul.f32 %v205, %v275
  %v308 = vpack.c.bf16 %v277, %v276
  %v309 = vpack.c.bf16 %v279, %v278
  %v310 = vpack.c.bf16 %v281, %v280
  %v311 = vpack.c.bf16 %v283, %v282
  %v312 = vpack.c.bf16 %v285, %v284
  %v313 = vpack.c.bf16 %v287, %v286
  %v314 = vpack.c.bf16 %v289, %v288
  %v315 = vpack.c.bf16 %v291, %v290
  %v316 = vpack.c.bf16 %v293, %v292
  %v317 = vpack.c.bf16 %v295, %v294
  %v318 = vpack.c.bf16 %v297, %v296
  %v319 = vpack.c.bf16 %v299, %v298
  %v320 = vpack.c.bf16 %v301, %v300
  %v321 = vpack.c.bf16 %v303, %v302
  %v322 = vpack.c.bf16 %v305, %v304
  %v323 = vpack.c.bf16 %v307, %v306
  %v340 = vunpack.c.l.b16 %v308
  %v341 = vunpack.c.h.b16 %v308
  %v342 = vunpack.c.l.b16 %v309
  %v343 = vunpack.c.h.b16 %v309
  %v344 = vunpack.c.l.b16 %v310
  %v345 = vunpack.c.h.b16 %v310
  %v346 = vunpack.c.l.b16 %v311
  %v347 = vunpack.c.h.b16 %v311
  %v348 = vunpack.c.l.b16 %v312
  %v349 = vunpack.c.h.b16 %v312
  %v350 = vunpack.c.l.b16 %v313
  %v351 = vunpack.c.h.b16 %v313
  %v352 = vunpack.c.l.b16 %v314
  %v353 = vunpack.c.h.b16 %v314
  %v354 = vunpack.c.l.b16 %v315
  %v355 = vunpack.c.h.b16 %v315
  %v356 = vunpack.c.l.b16 %v316
  %v357 = vunpack.c.h.b16 %v316
  %v358 = vunpack.c.l.b16 %v317
  %v359 = vunpack.c.h.b16 %v317
  %v360 = vunpack.c.l.b16 %v318
  %v361 = vunpack.c.h.b16 %v318
  %v362 = vunpack.c.l.b16 %v319
  %v363 = vunpack.c.h.b16 %v319
  %v364 = vunpack.c.l.b16 %v320
  %v365 = vunpack.c.h.b16 %v320
  %v366 = vunpack.c.l.b16 %v321
  %v367 = vunpack.c.h.b16 %v321
  %v368 = vunpack.c.l.b16 %v322
  %v369 = vunpack.c.h.b16 %v322
  %v370 = vunpack.c.l.b16 %v323
  %v371 = vunpack.c.h.b16 %v323
  %v372 = vpack.c.b16 %v340, %v340
  %v373 = vpack.c.b16 %v341, %v341
  %v374 = vpack.c.b16 %v342, %v342
  %v375 = vpack.c.b16 %v343, %v343
  %v376 = vpack.c.b16 %v344, %v344
  %v377 = vpack.c.b16 %v345, %v345
  %v378 = vpack.c.b16 %v346, %v346
  %v379 = vpack.c.b16 %v347, %v347
  %v380 = vpack.c.b16 %v348, %v348
  %v381 = vpack.c.b16 %v349, %v349
  %v382 = vpack.c.b16 %v350, %v350
  %v383 = vpack.c.b16 %v351, %v351
  %v384 = vpack.c.b16 %v352, %v352
  %v385 = vpack.c.b16 %v353, %v353
  %v386 = vpack.c.b16 %v354, %v354
  %v387 = vpack.c.b16 %v355, %v355
  %v388 = vpack.c.b16 %v356, %v356
  %v389 = vpack.c.b16 %v357, %v357
  %v390 = vpack.c.b16 %v358, %v358
  %v391 = vpack.c.b16 %v359, %v359
  %v392 = vpack.c.b16 %v360, %v360
  %v393 = vpack.c.b16 %v361, %v361
  %v394 = vpack.c.b16 %v362, %v362
  %v395 = vpack.c.b16 %v363, %v363
  %v396 = vpack.c.b16 %v364, %v364
  %v397 = vpack.c.b16 %v365, %v365
  %v398 = vpack.c.b16 %v366, %v366
  %v399 = vpack.c.b16 %v367, %v367
  %v400 = vpack.c.b16 %v368, %v368
  %v401 = vpack.c.b16 %v369, %v369
  %v402 = vpack.c.b16 %v370, %v370
  %v403 = vpack.c.b16 %v371, %v371
  %vm436 = vcmask 519168
  %437 = vst.msk [vmem:[%s1] sm:$0xf] %vm436, %v372
  %438 = vst.msk [vmem:[%s1 + $0x4] sm:$0xf] %vm436, %v373
  %439 = vst.msk [vmem:[%s1 + $0x8] sm:$0xf] %vm436, %v374
  %440 = vst.msk [vmem:[%s1 + $0xc] sm:$0xf] %vm436, %v375
  %441 = vst.msk [vmem:[%s1 + $0x10] sm:$0xf] %vm436, %v376
  %442 = vst.msk [vmem:[%s1 + $0x14] sm:$0xf] %vm436, %v377
  %443 = vst.msk [vmem:[%s1 + $0x18] sm:$0xf] %vm436, %v378
  %444 = vst.msk [vmem:[%s1 + $0x1c] sm:$0xf] %vm436, %v379
  %445 = vst.msk [vmem:[%s1 + $0x20] sm:$0xf] %vm436, %v380
  %446 = vst.msk [vmem:[%s1 + $0x24] sm:$0xf] %vm436, %v381
  %447 = vst.msk [vmem:[%s1 + $0x28] sm:$0xf] %vm436, %v382
  %448 = vst.msk [vmem:[%s1 + $0x2c] sm:$0xf] %vm436, %v383
  %449 = vst.msk [vmem:[%s1 + $0x30] sm:$0xf] %vm436, %v384
  %450 = vst.msk [vmem:[%s1 + $0x34] sm:$0xf] %vm436, %v385
  %451 = vst.msk [vmem:[%s1 + $0x38] sm:$0xf] %vm436, %v386
  %452 = vst.msk [vmem:[%s1 + $0x3c] sm:$0xf] %vm436, %v387
  %453 = vst.msk [vmem:[%s1 + $0x40] sm:$0xf] %vm436, %v388
  %454 = vst.msk [vmem:[%s1 + $0x44] sm:$0xf] %vm436, %v389
  %455 = vst.msk [vmem:[%s1 + $0x48] sm:$0xf] %vm436, %v390
  %456 = vst.msk [vmem:[%s1 + $0x4c] sm:$0xf] %vm436, %v391
  %457 = vst.msk [vmem:[%s1 + $0x50] sm:$0xf] %vm436, %v392
  %458 = vst.msk [vmem:[%s1 + $0x54] sm:$0xf] %vm436, %v393
  %459 = vst.msk [vmem:[%s1 + $0x58] sm:$0xf] %vm436, %v394
  %460 = vst.msk [vmem:[%s1 + $0x5c] sm:$0xf] %vm436, %v395
  %461 = vst.msk [vmem:[%s1 + $0x60] sm:$0xf] %vm436, %v396
  %462 = vst.msk [vmem:[%s1 + $0x64] sm:$0xf] %vm436, %v397
  %463 = vst.msk [vmem:[%s1 + $0x68] sm:$0xf] %vm436, %v398
  %464 = vst.msk [vmem:[%s1 + $0x6c] sm:$0xf] %vm436, %v399
  %465 = vst.msk [vmem:[%s1 + $0x70] sm:$0xf] %vm436, %v400
  %466 = vst.msk [vmem:[%s1 + $0x74] sm:$0xf] %vm436, %v401
  %467 = vst.msk [vmem:[%s1 + $0x78] sm:$0xf] %vm436, %v402
  %468 = vst.msk [vmem:[%s1 + $0x7c] sm:$0xf] %vm436, %v403
  // Predicated region
  $region6: #{tpu_custom_call.1} parent=0 // pred_check
    _
  $region7: #{tpu_custom_call.1} parent=0 // pred_check_branch
    %470 = sbr.rel (0) target = $region9
  $region8: #{tpu_custom_call.1} parent=0 // pred_region
    _
  $region9: #{tpu_custom_call.1} parent=0 // pred_fallthru
    _
  // Predicated region
  $region10: #{tpu_custom_call.1} parent=0 // pred_check
    _
  $region11: #{tpu_custom_call.1} parent=0 // pred_check_branch
    %472 = sbr.rel (0) target = $region13
  $region12: #{tpu_custom_call.1} parent=0 // pred_region
    _
  $region13: #{tpu_custom_call.1} parent=0 // pred_fallthru
    _

</llo_original>
